<compile_context>
chip_gen: v6e
topology: v6e:2x2x1
jax: 0.10.0
libtpu: 0.0.40
codegen_flags: <defaults>
</compile_context>

<pallas_src>
import math
import jax
import jax.numpy as jnp
from jax.experimental import pallas as pl
from jax.experimental.pallas import tpu as pltpu


def _mlp_kernel(x_ref, w1_ref, b1_ref, w2_ref, b2_ref, o_ref):
    # First linear + bias + ReLU.  Weights/biases use constant index_maps so
    # they are DMA'd once and stay resident in VMEM across all grid steps.
    h = jnp.dot(x_ref[...], w1_ref[...], preferred_element_type=jnp.float32)
    h = jnp.maximum(h + b1_ref[...], 0.0)          # (TM, hidden) + (1, hidden)
    # Dropout: identity in eval mode.
    # TODO(synk): training-mode dropout (PRNG mask + 1/(1-p) scale) not emitted.
    # Second linear + bias.
    out = jnp.dot(h.astype(w2_ref.dtype), w2_ref[...],
                  preferred_element_type=jnp.float32)
    o_ref[...] = (out + b2_ref[...]).astype(o_ref.dtype)  # lane-dense 128-wide store


def _round_up(x: int, m: int) -> int:
    return -(-x // m) * m


def _pick_tile_rows(rows: int, requested: int) -> int:
    """Pick a row-tile size: multiple of 8, not absurdly larger than `rows`,
    and (for large inputs) small enough to keep >= 4 grid steps so v7x's two
    TensorCores both get work on the "parallel" row axis."""
    tr = min(requested, _round_up(rows, 8))
    tr = max(8, (tr // 8) * 8)
    min_steps = 4
    while tr > 8 and -(-rows // tr) < min_steps and rows > min_steps * 8:
        tr = max(8, ((tr // 2) // 8) * 8)
    return tr


def shallow_transcriber_forward(x, w1, b1, w2, b2, *, tile_rows=512):
    """x: (B, F, in_features) float32. Returns (B, F, out_features) float32."""
    B, F, in_features = x.shape
    hidden = w1.shape[1]
    out_features = w2.shape[1]

    rows = B * F
    tm = _pick_tile_rows(rows, tile_rows)
    grid_len = pl.cdiv(rows, tm)
    rows_padded = grid_len * tm

    x2d = x.reshape(rows, in_features)
    if rows_padded != rows:
        # Ragged tail: zero-pad rows up to a tile multiple; padded rows are
        # computed (cheaply) and sliced off below.
        x2d = jnp.pad(x2d, ((0, rows_padded - rows), (0, 0)))

    b1_2d = b1.reshape(1, hidden)
    b2_2d = b2.reshape(1, out_features)

    bytes_per = jnp.dtype(x.dtype).itemsize
    cost = pl.CostEstimate(
        flops=2 * rows_padded * (in_features * hidden + hidden * out_features),
        transcendentals=0,
        bytes_accessed=(rows_padded * in_features * bytes_per
                        + in_features * hidden * 4 + hidden * 4
                        + hidden * out_features * 4 + out_features * 4
                        + rows_padded * out_features * bytes_per),
    )

    out2d = pl.pallas_call(
        _mlp_kernel,
        out_shape=jax.ShapeDtypeStruct((rows_padded, out_features), x.dtype),
        grid_spec=pltpu.PrefetchScalarGridSpec(
            num_scalar_prefetch=0,
            grid=(grid_len,),
            in_specs=[
                pl.BlockSpec((tm, in_features), lambda i: (i, 0)),
                pl.BlockSpec((in_features, hidden), lambda i: (0, 0)),
                pl.BlockSpec((1, hidden), lambda i: (0, 0)),
                pl.BlockSpec((hidden, out_features), lambda i: (0, 0)),
                pl.BlockSpec((1, out_features), lambda i: (0, 0)),
            ],
            out_specs=pl.BlockSpec((tm, out_features), lambda i: (i, 0)),
        ),
        compiler_params=pltpu.CompilerParams(
            dimension_semantics=("parallel",),
            vmem_limit_bytes=64 << 20,
        ),
        cost_estimate=cost,
    )(x2d, w1, b1_2d, w2, b2_2d)

    if rows_padded != rows:
        out2d = out2d[:rows]
    return out2d.reshape(B, F, out_features)


def init_params(key, in_features, hidden_units, out_features):
    """Deterministic kaiming_normal_ init (fan_in, gain=sqrt(2)), zero biases.

    Weights returned already transposed to (in, out) layout used by the kernel.
    """
    k1, k2 = jax.random.split(key)
    std1 = math.sqrt(2.0 / in_features)
    std2 = math.sqrt(2.0 / hidden_units)
    w1 = std1 * jax.random.normal(k1, (in_features, hidden_units), dtype=jnp.float32)
    b1 = jnp.zeros((hidden_units,), dtype=jnp.float32)
    w2 = std2 * jax.random.normal(k2, (hidden_units, out_features), dtype=jnp.float32)
    b2 = jnp.zeros((out_features,), dtype=jnp.float32)
    return w1, b1, w2, b2


if __name__ == "__main__":
    # Small shapes consistent with the module's forward:
    # (Batch, Frames, in_features) -> (Batch, Frames, out_features=128)
    B, F, in_features, hidden_units, out_features = 2, 9, 32, 32, 128  # 18 rows: exercises ragged tail

    key = jax.random.PRNGKey(0)
    kx, kp = jax.random.split(key)
    x = jax.random.normal(kx, (B, F, in_features), dtype=jnp.float32)
    w1, b1, w2, b2 = init_params(kp, in_features, hidden_units, out_features)

    out = shallow_transcriber_forward(x, w1, b1, w2, b2, tile_rows=512)
    out = jax.block_until_ready(out)

    # Reference check in plain JAX (same semantics: Linear->ReLU->(Dropout eval)->Linear).
    ref = jnp.maximum(x.reshape(-1, in_features) @ w1 + b1, 0.0) @ w2 + b2
    ref = ref.reshape(B, F, out_features)
    assert out.shape == (B, F, out_features)
    assert jnp.allclose(out, ref, atol=1e-5, rtol=1e-5)

    print("KERNEL_OK")
</pallas_src>

<mosaic_0001>
module attributes {stable_mosaic.version = 11 : i64} {
  func.func @_mlp_kernel(%arg0: i32, %arg1: memref<24x32xf32, #tpu.memory_space<vmem>>, %arg2: memref<32x32xf32, #tpu.memory_space<vmem>>, %arg3: memref<1x32xf32, #tpu.memory_space<vmem>>, %arg4: memref<32x128xf32, #tpu.memory_space<vmem>>, %arg5: memref<1x128xf32, #tpu.memory_space<vmem>>, %arg6: memref<24x128xf32, #tpu.memory_space<vmem>>) attributes {dimension_semantics = [#tpu.dimension_semantics<parallel>], iteration_bounds = array<i64: 1>, scalar_prefetch = 0 : i64, scratch_operands = 0 : i64, tpu.core_type = #tpu.core_type<tc>, window_params = [{transform_indices = @transform_0, window_bounds = array<i64: 24, 32>}, {pipeline_mode = #tpu.pipeline_mode<synchronous>, transform_indices = @transform_1, window_bounds = array<i64: 32, 32>}, {pipeline_mode = #tpu.pipeline_mode<synchronous>, transform_indices = @transform_2, window_bounds = array<i64: 1, 32>}, {pipeline_mode = #tpu.pipeline_mode<synchronous>, transform_indices = @transform_3, window_bounds = array<i64: 32, 128>}, {pipeline_mode = #tpu.pipeline_mode<synchronous>, transform_indices = @transform_4, window_bounds = array<i64: 1, 128>}, {transform_indices = @transform_5, window_bounds = array<i64: 24, 128>}]} {
    %c0 = arith.constant 0 : index
    %c0_0 = arith.constant 0 : index
    %0 = vector.load %arg1[%c0, %c0_0] : memref<24x32xf32, #tpu.memory_space<vmem>>, vector<24x32xf32>
    %c0_1 = arith.constant 0 : index
    %c0_2 = arith.constant 0 : index
    %1 = vector.load %arg2[%c0_1, %c0_2] : memref<32x32xf32, #tpu.memory_space<vmem>>, vector<32x32xf32>
    %cst = arith.constant dense<0.000000e+00> : vector<24x32xf32>
    %2 = tpu.matmul %0, %1, %cst {dimension_numbers = #tpu.dot_dimension_numbers<[1], [0], [0], [1], [0, 0, 1, 1], [], []>} : vector<24x32xf32>, vector<32x32xf32>, vector<24x32xf32> -> vector<24x32xf32>
    %c0_3 = arith.constant 0 : index
    %c0_4 = arith.constant 0 : index
    %3 = vector.load %arg3[%c0_3, %c0_4] : memref<1x32xf32, #tpu.memory_space<vmem>>, vector<1x32xf32>
    %4 = vector.broadcast %3 : vector<1x32xf32> to vector<24x32xf32>
    %5 = arith.addf %2, %4 : vector<24x32xf32>
    %cst_5 = arith.constant 0.000000e+00 : f32
    %6 = vector.broadcast %cst_5 : f32 to vector<24x32xf32>
    %7 = arith.maximumf %5, %6 : vector<24x32xf32>
    %c0_6 = arith.constant 0 : index
    %c0_7 = arith.constant 0 : index
    %8 = vector.load %arg4[%c0_6, %c0_7] : memref<32x128xf32, #tpu.memory_space<vmem>>, vector<32x128xf32>
    %cst_8 = arith.constant dense<0.000000e+00> : vector<24x128xf32>
    %9 = tpu.matmul %7, %8, %cst_8 {dimension_numbers = #tpu.dot_dimension_numbers<[1], [0], [0], [1], [0, 0, 1, 1], [], []>} : vector<24x32xf32>, vector<32x128xf32>, vector<24x128xf32> -> vector<24x128xf32>
    %c0_9 = arith.constant 0 : index
    %c0_10 = arith.constant 0 : index
    %10 = vector.load %arg5[%c0_9, %c0_10] : memref<1x128xf32, #tpu.memory_space<vmem>>, vector<1x128xf32>
    %11 = vector.broadcast %10 : vector<1x128xf32> to vector<24x128xf32>
    %12 = arith.addf %9, %11 : vector<24x128xf32>
    %c0_11 = arith.constant 0 : index
    %c0_12 = arith.constant 0 : index
    %13 = vector.load %arg6[%c0_11, %c0_12] : memref<24x128xf32, #tpu.memory_space<vmem>>, vector<24x128xf32>
    tpu.vector_store %arg6[%c0_11, %c0_12], %12 {strides = array<i32>} : memref<24x128xf32, #tpu.memory_space<vmem>>, vector<24x128xf32>,
    return
  }
  func.func @transform_0(%arg0: i32) -> (i32, i32) {
    %c0_i32 = arith.constant 0 : i32
    %c0_i32_0 = arith.constant 0 : i32
    return %arg0, %c0_i32 : i32, i32
  }
  func.func @transform_1(%arg0: i32) -> (i32, i32) {
    %c0_i32 = arith.constant 0 : i32
    %c0_i32_0 = arith.constant 0 : i32
    %c0_i32_1 = arith.constant 0 : i32
    return %c0_i32, %c0_i32_0 : i32, i32
  }
  func.func @transform_2(%arg0: i32) -> (i32, i32) {
    %c0_i32 = arith.constant 0 : i32
    %c0_i32_0 = arith.constant 0 : i32
    %c0_i32_1 = arith.constant 0 : i32
    return %c0_i32, %c0_i32_0 : i32, i32
  }
  func.func @transform_3(%arg0: i32) -> (i32, i32) {
    %c0_i32 = arith.constant 0 : i32
    %c0_i32_0 = arith.constant 0 : i32
    %c0_i32_1 = arith.constant 0 : i32
    return %c0_i32, %c0_i32_0 : i32, i32
  }
  func.func @transform_4(%arg0: i32) -> (i32, i32) {
    %c0_i32 = arith.constant 0 : i32
    %c0_i32_0 = arith.constant 0 : i32
    %c0_i32_1 = arith.constant 0 : i32
    return %c0_i32, %c0_i32_0 : i32, i32
  }
  func.func @transform_5(%arg0: i32) -> (i32, i32) {
    %c0_i32 = arith.constant 0 : i32
    %c0_i32_0 = arith.constant 0 : i32
    return %arg0, %c0_i32 : i32, i32
  }
}

</mosaic_0001>

<llo_original>
// kernel: tpu_custom_call.1
$region0: #{tpu_custom_call.1}
  #allocation0 [shape = 'u32[]', space=smem, size = 0x4, offset = 0x4, fixed_abs, tag = 'smem constant byte address 0x4 - core index']
  #allocation1 [shape = 'u32[144,128]{1,0:T(1,128)}', space=vmem, size = 0x12000, scoped, tag = 'internal scratch']
  %s0 = inlined_call_operand.hbm [shape: f32[24,32], index: 0, kind: input, shape index: {}]
  %s1 = inlined_call_operand.hbm [shape: f32[32,32], index: 1, kind: input, shape index: {}]
  %s2 = inlined_call_operand.vmem [shape: f32[1,32], index: 2, kind: input, shape index: {}]
  %s3 = inlined_call_operand.hbm [shape: f32[32,128], index: 3, kind: input, shape index: {}]
  %s4 = inlined_call_operand.vmem [shape: f32[1,128], index: 4, kind: input, shape index: {}]
  %s5 = inlined_call_operand.hbm [shape: f32[24,128], index: 5, kind: output, shape index: {}]
  %s6 = sld [smem:[#allocation0]]
  $region42: #{tpu_custom_call.1} parent=0
    _
  %s8 = ssub.s32 1, %s6
  %s9 = scalar_select 0, %s8, %s6
  $region1: #{tpu_custom_call.1} parent=0
    #allocation2 [shape = 'u8[12288]{0}', space=vmem, size = 0x3000, scoped, tag = 'input window, operand 0, single buffered']
    #allocation3 [shape = 's32[1]{0}', space=sflag, size = 0x4, scoped, tag = 'scoped memory for tpu_custom_call.1']
    #allocation4 [shape = 's32[1]{0}', space=sflag, size = 0x4, scoped, tag = 'scoped memory for tpu_custom_call.1']
    #allocation5 [shape = 'u8[16384]{0}', space=vmem, size = 0x4000, scoped, tag = 'input window, operand 1, single buffered']
    #allocation6 [shape = 's32[1]{0}', space=sflag, size = 0x4, scoped, tag = 'scoped memory for tpu_custom_call.1']
    #allocation7 [shape = 'u8[16384]{0}', space=vmem, size = 0x4000, scoped, tag = 'input window, operand 3, single buffered']
    #allocation8 [shape = 'u8[12288]{0}', space=vmem, size = 0x3000, scoped, tag = 'output window, operand 0, single buffered']
    %10 = vsyncpa [#allocation3], 0
    %11 = vsyncpa [#allocation6], 0
    %12 = vsyncpa [#allocation4], 0
    // Predicated region
    $region2: #{tpu_custom_call.1} parent=1 // pred_check
      _
    $region3: #{tpu_custom_call.1} parent=1 // pred_check_branch
      %14 = sbr.rel (0) target = $region5
    $region4: #{tpu_custom_call.1} parent=1 // pred_region
      %s16 = ssub.s32 384, 384
      %17 = vsyncadd [#allocation3], %s16
      %s18 = sshll.u32 [#allocation2], 4
      %s19 = int_to_ptr.vmem [resolvable:$true] %s18
      %24 = dma.hbm_to_vmem [thread:$0]  %s0, 384, %s19, [#allocation3], 128, 128, 8
    $region5: #{tpu_custom_call.1} parent=1 // pred_fallthru
      _
    // Predicated region
    $region6: #{tpu_custom_call.1} parent=1 // pred_check
      _
    $region7: #{tpu_custom_call.1} parent=1 // pred_check_branch
      %26 = sbr.rel (0) target = $region9
    $region8: #{tpu_custom_call.1} parent=1 // pred_region
      %s28 = ssub.s32 512, 512
      %29 = vsyncadd [#allocation6], %s28
      %s30 = sshll.u32 [#allocation5], 4
      %s31 = int_to_ptr.vmem [resolvable:$true] %s30
      %36 = dma.hbm_to_vmem [thread:$0]  %s1, 512, %s31, [#allocation6], 128, 128, 8
    $region9: #{tpu_custom_call.1} parent=1 // pred_fallthru
      _
    // Predicated region
    $region10: #{tpu_custom_call.1} parent=1 // pred_check
      _
    $region11: #{tpu_custom_call.1} parent=1 // pred_check_branch
      %38 = sbr.rel (0) target = $region13
    $region12: #{tpu_custom_call.1} parent=1 // pred_region
      _
    $region13: #{tpu_custom_call.1} parent=1 // pred_fallthru
      _
    // Predicated region
    $region14: #{tpu_custom_call.1} parent=1 // pred_check
      _
    $region15: #{tpu_custom_call.1} parent=1 // pred_check_branch
      %40 = sbr.rel (0) target = $region17
    $region16: #{tpu_custom_call.1} parent=1 // pred_region
      %s42 = ssub.s32 512, 512
      %43 = vsyncadd [#allocation6], %s42
      %s44 = sshll.u32 [#allocation7], 4
      %s45 = int_to_ptr.vmem [resolvable:$true] %s44
      %50 = dma.hbm_to_vmem [thread:$0]  %s3, 512, %s45, [#allocation6], 128, 128, 8
    $region17: #{tpu_custom_call.1} parent=1 // pred_fallthru
      _
    // Predicated region
    $region18: #{tpu_custom_call.1} parent=1 // pred_check
      _
    $region19: #{tpu_custom_call.1} parent=1 // pred_check_branch
      %52 = sbr.rel (0) target = $region21
    $region20: #{tpu_custom_call.1} parent=1 // pred_region
      _
    $region21: #{tpu_custom_call.1} parent=1 // pred_fallthru
      _
    // Predicated region
    $region22: #{tpu_custom_call.1} parent=1 // pred_check
      _
    $region23: #{tpu_custom_call.1} parent=1 // pred_check_branch
      %54 = sbr.rel (0) target = $region25
    $region24: #{tpu_custom_call.1} parent=1 // pred_region
      %55 = dma.done [#allocation3], 384
    $region25: #{tpu_custom_call.1} parent=1 // pred_fallthru
      _
    // Predicated region
    $region26: #{tpu_custom_call.1} parent=1 // pred_check
      _
    $region27: #{tpu_custom_call.1} parent=1 // pred_check_branch
      %57 = sbr.rel (0) target = $region29
    $region28: #{tpu_custom_call.1} parent=1 // pred_region
      %58 = dma.done [#allocation6], 512
    $region29: #{tpu_custom_call.1} parent=1 // pred_fallthru
      _
    // Predicated region
    $region30: #{tpu_custom_call.1} parent=1 // pred_check
      _
    $region31: #{tpu_custom_call.1} parent=1 // pred_check_branch
      %60 = sbr.rel (0) target = $region33
    $region32: #{tpu_custom_call.1} parent=1 // pred_region
      %61 = dma.done [#allocation6], 512
    $region33: #{tpu_custom_call.1} parent=1 // pred_fallthru
      _
    %v62 = vld [vmem:[#allocation2] sm:$0xff]
    %v63 = vld [vmem:[#allocation2 + $0x8] sm:$0xff]
    %v64 = vld [vmem:[#allocation2 + $0x10] sm:$0xff]
    %v65 = vld [vmem:[#allocation5] sm:$0xff]
    %v66 = vld [vmem:[#allocation5 + $0x8] sm:$0xff]
    %v67 = vld [vmem:[#allocation5 + $0x10] sm:$0xff]
    %v68 = vld [vmem:[#allocation5 + $0x18] sm:$0xff]
    %v69 = vld [vmem:[%s2] sm:$0x1]
    %v71 = vlaneseq
    %v72 = vshrl.u32 %v71, 7
    %v73 = vsub.s32 0, %v72
    %v74 = vrot.slane %v69, %v73
    %vm76 = vcmask 261120
    %v78 = vsel %vm76, %v62, 0
    %v81 = vsel %vm76, %v63, 0
    %v84 = vsel %vm76, %v64, 0
    %86 = vmatprep.subr.mxu0 0.0
    %87 = vmatpush1.msra.mxu0 0.0
    %88 = vmatprep.subr.mxu0 0.0
    %89 = vmatpush1.msra.mxu0 0.0
    %90 = vmatprep.subr.mxu0 0.0
    %91 = vmatpush1.msra.mxu0 0.0
    %92 = vmatprep.subr.mxu0 0.0
    %93 = vmatpush1.msra.mxu0 0.0
    %94 = vmatprep.subr.mxu0 0.0
    %95 = vmatpush1.msra.mxu0 0.0
    %96 = vmatprep.subr.mxu0 0.0
    %97 = vmatpush1.msra.mxu0 0.0
    %98 = vmatprep.subr.mxu0 0.0
    %99 = vmatpush1.msra.mxu0 0.0
    %100 = vmatprep.subr.mxu0 0.0
    %101 = vmatpush1.msra.mxu0 0.0
    %102 = vmatprep.subr.mxu0 0.0
    %103 = vmatpush1.msra.mxu0 0.0
    %104 = vmatprep.subr.mxu0 0.0
    %105 = vmatpush1.msra.mxu0 0.0
    %106 = vmatprep.subr.mxu0 0.0
    %107 = vmatpush1.msra.mxu0 0.0
    %108 = vmatprep.subr.mxu0 0.0
    %109 = vmatpush1.msra.mxu0 0.0
    %110 = vmatprep.subr.mxu0 0.0
    %111 = vmatpush1.msra.mxu0 %v68
    %112 = vmatprep.subr.mxu0 0.0
    %113 = vmatpush1.msra.mxu0 %v67
    %114 = vmatprep.subr.mxu0 0.0
    %115 = vmatpush1.msra.mxu0 %v66
    %116 = vmatprep.subr.mxu0 0.0
    %117 = vmatpush1.msra.mxu0 %v65
    %118 = vmatprep.subr.mxu0 0.0
    %119 = vmatpush2.msra.mxu0 0.0
    %120 = vmatprep.subr.mxu0 0.0
    %121 = vmatpush2.msra.mxu0 0.0
    %122 = vmatprep.subr.mxu0 0.0
    %123 = vmatpush2.msra.mxu0 0.0
    %124 = vmatprep.subr.mxu0 0.0
    %125 = vmatpush2.msra.mxu0 0.0
    %126 = vmatprep.subr.mxu0 0.0
    %127 = vmatpush2.msra.mxu0 0.0
    %128 = vmatprep.subr.mxu0 0.0
    %129 = vmatpush2.msra.mxu0 0.0
    %130 = vmatprep.subr.mxu0 0.0
    %131 = vmatpush2.msra.mxu0 0.0
    %132 = vmatprep.subr.mxu0 0.0
    %133 = vmatpush2.msra.mxu0 0.0
    %134 = vmatprep.subr.mxu0 0.0
    %135 = vmatpush2.msra.mxu0 0.0
    %136 = vmatprep.subr.mxu0 0.0
    %137 = vmatpush2.msra.mxu0 0.0
    %138 = vmatprep.subr.mxu0 0.0
    %139 = vmatpush2.msra.mxu0 0.0
    %140 = vmatprep.subr.mxu0 0.0
    %141 = vmatpush2.msra.mxu0 0.0
    %142 = vmatprep.subr.mxu0 0.0
    %143 = vmatpush2.msra.mxu0 0.0
    %144 = vmatprep.subr.mxu0 0.0
    %145 = vmatpush2.msra.mxu0 0.0
    %146 = vmatprep.subr.mxu0 0.0
    %147 = vmatpush2.msra.mxu0 0.0
    %148 = vmatprep.subr.mxu0 0.0
    %149 = vmatpush2.msra.mxu0 0.0
    %150 = vmatprep.mubr.f32.mxu0 0.0
    %151 = vmatmul.mubr.f32.gmra.mxu0 %v78
    %v152 = vpop.f32.mrf.mxu0
    %v153 = vadd.f32 %v74, %v152
    %v154 = vpop.f32.mrf.mxu0
    %155 = vmatprep.mubr.f32.mxu0 0.0
    %156 = vmatmul.mubr.f32.gmra.mxu0 %v81
    %v157 = vpop.f32.mrf.mxu0
    %v158 = vadd.f32 %v74, %v157
    %v159 = vpop.f32.mrf.mxu0
    %160 = vmatprep.mubr.f32.mxu0 0.0
    %161 = vmatmul.mubr.f32.gmra.mxu0 %v84
    %v162 = vpop.f32.mrf.mxu0
    %v163 = vadd.f32 %v74, %v162
    %v164 = vpop.f32.mrf.mxu0
    %165 = vdwg.mxu0
    %v166 = vmax.f32 %v153, 0.0
    %v167 = vmax.f32 %v158, 0.0
    %v168 = vmax.f32 %v163, 0.0
    %v169 = vld [vmem:[#allocation7] sm:$0xff]
    %v170 = vld [vmem:[#allocation7 + $0x8] sm:$0xff]
    %v171 = vld [vmem:[#allocation7 + $0x10] sm:$0xff]
    %v172 = vld [vmem:[#allocation7 + $0x18] sm:$0xff]
    %v173 = vld [vmem:[%s4] sm:$0x1]
    %v175 = vlaneseq
    %v176 = vshrl.u32 %v175, 7
    %v177 = vsub.s32 0, %v176
    %v178 = vrot.slane %v173, %v177
    %v181 = vsel %vm76, %v166, 0
    %v184 = vsel %vm76, %v167, 0
    %v187 = vsel %vm76, %v168, 0
    %189 = vmatprep.subr.mxu0 0.0
    %190 = vmatpush1.msra.mxu0 0.0
    %191 = vmatprep.subr.mxu0 0.0
    %192 = vmatpush1.msra.mxu0 0.0
    %193 = vmatprep.subr.mxu0 0.0
    %194 = vmatpush1.msra.mxu0 0.0
    %195 = vmatprep.subr.mxu0 0.0
    %196 = vmatpush1.msra.mxu0 0.0
    %197 = vmatprep.subr.mxu0 0.0
    %198 = vmatpush1.msra.mxu0 0.0
    %199 = vmatprep.subr.mxu0 0.0
    %200 = vmatpush1.msra.mxu0 0.0
    %201 = vmatprep.subr.mxu0 0.0
    %202 = vmatpush1.msra.mxu0 0.0
    %203 = vmatprep.subr.mxu0 0.0
    %204 = vmatpush1.msra.mxu0 0.0
    %205 = vmatprep.subr.mxu0 0.0
    %206 = vmatpush1.msra.mxu0 0.0
    %207 = vmatprep.subr.mxu0 0.0
    %208 = vmatpush1.msra.mxu0 0.0
    %209 = vmatprep.subr.mxu0 0.0
    %210 = vmatpush1.msra.mxu0 0.0
    %211 = vmatprep.subr.mxu0 0.0
    %212 = vmatpush1.msra.mxu0 0.0
    %213 = vmatprep.subr.mxu0 0.0
    %214 = vmatpush1.msra.mxu0 %v172
    %215 = vmatprep.subr.mxu0 0.0
    %216 = vmatpush1.msra.mxu0 %v171
    %217 = vmatprep.subr.mxu0 0.0
    %218 = vmatpush1.msra.mxu0 %v170
    %219 = vmatprep.subr.mxu0 0.0
    %220 = vmatpush1.msra.mxu0 %v169
    %221 = vmatprep.subr.mxu0 0.0
    %222 = vmatpush2.msra.mxu0 0.0
    %223 = vmatprep.subr.mxu0 0.0
    %224 = vmatpush2.msra.mxu0 0.0
    %225 = vmatprep.subr.mxu0 0.0
    %226 = vmatpush2.msra.mxu0 0.0
    %227 = vmatprep.subr.mxu0 0.0
    %228 = vmatpush2.msra.mxu0 0.0
    %229 = vmatprep.subr.mxu0 0.0
    %230 = vmatpush2.msra.mxu0 0.0
    %231 = vmatprep.subr.mxu0 0.0
    %232 = vmatpush2.msra.mxu0 0.0
    %233 = vmatprep.subr.mxu0 0.0
    %234 = vmatpush2.msra.mxu0 0.0
    %235 = vmatprep.subr.mxu0 0.0
    %236 = vmatpush2.msra.mxu0 0.0
    %237 = vmatprep.subr.mxu0 0.0
    %238 = vmatpush2.msra.mxu0 0.0
    %239 = vmatprep.subr.mxu0 0.0
    %240 = vmatpush2.msra.mxu0 0.0
    %241 = vmatprep.subr.mxu0 0.0
    %242 = vmatpush2.msra.mxu0 0.0
    %243 = vmatprep.subr.mxu0 0.0
    %244 = vmatpush2.msra.mxu0 0.0
    %245 = vmatprep.subr.mxu0 0.0
    %246 = vmatpush2.msra.mxu0 0.0
    %247 = vmatprep.subr.mxu0 0.0
    %248 = vmatpush2.msra.mxu0 0.0
    %249 = vmatprep.subr.mxu0 0.0
    %250 = vmatpush2.msra.mxu0 0.0
    %251 = vmatprep.subr.mxu0 0.0
    %252 = vmatpush2.msra.mxu0 0.0
    %253 = vmatprep.mubr.f32.mxu0 0.0
    %254 = vmatmul.mubr.f32.gmra.mxu0 %v181
    %v255 = vpop.f32.mrf.mxu0
    %v256 = vadd.f32 %v178, %v255
    %v257 = vpop.f32.mrf.mxu0
    %258 = vmatprep.mubr.f32.mxu0 0.0
    %259 = vmatmul.mubr.f32.gmra.mxu0 %v184
    %v260 = vpop.f32.mrf.mxu0
    %v261 = vadd.f32 %v178, %v260
    %v262 = vpop.f32.mrf.mxu0
    %263 = vmatprep.mubr.f32.mxu0 0.0
    %264 = vmatmul.mubr.f32.gmra.mxu0 %v187
    %v265 = vpop.f32.mrf.mxu0
    %v266 = vadd.f32 %v178, %v265
    %v267 = vpop.f32.mrf.mxu0
    %268 = vdwg.mxu0
    %269 = vst [vmem:[#allocation8] sm:$0xff] %v256
    %270 = vst [vmem:[#allocation8 + $0x8] sm:$0xff] %v261
    %271 = vst [vmem:[#allocation8 + $0x10] sm:$0xff] %v266
    // Predicated region
    $region34: #{tpu_custom_call.1} parent=1 // pred_check
      _
    $region35: #{tpu_custom_call.1} parent=1 // pred_check_branch
      %273 = sbr.rel (0) target = $region37
    $region36: #{tpu_custom_call.1} parent=1 // pred_region
      %s275 = ssub.s32 384, 384
      %276 = vsyncadd [#allocation4], %s275
      %s277 = sshll.u32 [#allocation8], 4
      %s278 = int_to_ptr.vmem [resolvable:$true] %s277
      %283 = dma.vmem_to_hbm [thread:$0]  %s278, 384, %s5, [#allocation4], 128, 128, 8
    $region37: #{tpu_custom_call.1} parent=1 // pred_fallthru
      _
    // Predicated region
    $region38: #{tpu_custom_call.1} parent=1 // pred_check
      _
    $region39: #{tpu_custom_call.1} parent=1 // pred_check_branch
      %285 = sbr.rel (0) target = $region41
    $region40: #{tpu_custom_call.1} parent=1 // pred_region
      %286 = dma.done [#allocation4], 384
    $region41: #{tpu_custom_call.1} parent=1 // pred_fallthru
      _
    %287 = vsyncpa [#allocation3], 1
    %288 = vsyncpa [#allocation6], 1
    %289 = vsyncpa [#allocation4], 1

</llo_original>
